<compile_context>
chip_gen: v6e
topology: v6e:2x2x1
jax: 0.10.0
libtpu: 0.0.40
codegen_flags: <defaults>
</compile_context>

<pallas_src>
import jax
import jax.numpy as jnp
from jax.experimental import pallas as pl
from jax.experimental.pallas import tpu as pltpu  # noqa: F401  (kept for TPU backend)


def encoder_kernel(x_ref, w1_ref, b1_ref, w2_ref, b2_ref, o_ref):
    # x_ref : [1, Bp]   batch on lanes
    # w1_ref: [H, 1]    linear1.weight (PyTorch layout, D_in == 1)
    # b1_ref: [H, 1]
    # w2_ref: [H, 1]    linear2.weight transposed (D_out == 1)
    # b2_ref: [1, 1]
    # o_ref : [1, Bp]
    x = x_ref[...]                                                    # [1, Bp]
    # Layer 1: K = 1 -> outer product on the VPU (no MXU).
    h = jnp.tanh(w1_ref[...] * x + b1_ref[...])                       # [H, Bp]
    # Layer 2: N = 1 -> VPU multiply + sublane (XLU) reduction (no MXU).
    y = jnp.sum(w2_ref[...] * h, axis=0, keepdims=True) + b2_ref[...]  # [1, Bp]
    o_ref[...] = jnp.tanh(y).astype(o_ref.dtype)


def encoder_forward(data, w1, b1, w2, b2):
    """Forward pass matching the PyTorch Encoder.

    data: [B, D_in]  with D_in == 1
    w1  : [H, D_in]  (nn.Linear layout)      b1: [H]
    w2  : [D_out, H] (nn.Linear layout)      b2: [D_out], D_out == 1
    returns [B, D_out]
    """
    B, d_in = data.shape
    d_out, H = w2.shape
    assert d_in == 1 and d_out == 1, "kernel specialized for D_in = D_out = 1"

    # Lane-dense layout: batch on lanes, padded up to a multiple of 128.
    Bp = ((B + 127) // 128) * 128
    x_t = jnp.zeros((1, Bp), jnp.float32).at[:, :B].set(data.astype(jnp.float32).T)

    w1_c = w1.reshape(H, 1).astype(jnp.float32)   # [H, 1]
    b1_c = b1.reshape(H, 1).astype(jnp.float32)   # [H, 1]
    w2_c = w2.T.astype(jnp.float32)               # [H, 1]
    b2_c = b2.reshape(1, 1).astype(jnp.float32)   # [1, 1]

    # Single grid point, full-array blocks (block_shape == full dims is allowed).
    full = lambda shape: pl.BlockSpec(shape, lambda: (0,) * len(shape))

    out_pad = pl.pallas_call(
        encoder_kernel,
        out_shape=jax.ShapeDtypeStruct((1, Bp), jnp.float32),
        grid=(),
        in_specs=[
            full((1, Bp)),
            full((H, 1)),
            full((H, 1)),
            full((H, 1)),
            full((1, 1)),
        ],
        out_specs=full((1, Bp)),
    )(x_t, w1_c, b1_c, w2_c, b2_c)

    # Strip padded lanes and return in the PyTorch [B, D_out] layout.
    return out_pad[:, :B].T


def init_params(key, input_size, hidden_size, output_size):
    # nn.Linear default init: U(-1/sqrt(fan_in), 1/sqrt(fan_in)), PyTorch layouts.
    k1, k2, k3, k4 = jax.random.split(key, 4)
    bound1 = 1.0 / jnp.sqrt(input_size)
    bound2 = 1.0 / jnp.sqrt(hidden_size)
    w1 = jax.random.uniform(k1, (hidden_size, input_size), jnp.float32, -bound1, bound1)
    b1 = jax.random.uniform(k2, (hidden_size,), jnp.float32, -bound1, bound1)
    w2 = jax.random.uniform(k3, (output_size, hidden_size), jnp.float32, -bound2, bound2)
    b2 = jax.random.uniform(k4, (output_size,), jnp.float32, -bound2, bound2)
    return w1, b1, w2, b2


if __name__ == "__main__":
    input_size, hidden_size, output_size = 1, 10, 1
    batch = 100  # matches x = np.random.rand(100, 1) in the reference script

    key = jax.random.PRNGKey(0)
    k_data, k_params = jax.random.split(key)
    data = jax.random.uniform(k_data, (batch, input_size), jnp.float32)
    w1, b1, w2, b2 = init_params(k_params, input_size, hidden_size, output_size)

    out = encoder_forward(data, w1, b1, w2, b2)
    out = jax.block_until_ready(out)

    # Reference check in plain JAX (PyTorch-layout weights).
    ref = jnp.tanh(jnp.tanh(data @ w1.T + b1) @ w2.T + b2)
    assert out.shape == (batch, output_size)
    assert jnp.allclose(out, ref, atol=1e-5, rtol=1e-5)

    print("KERNEL_OK")
</pallas_src>

<mosaic_0001>
module attributes {stable_mosaic.version = 11 : i64} {
  func.func @encoder_kernel(%arg0: memref<1x128xf32, #tpu.memory_space<vmem>>, %arg1: memref<10x1xf32, #tpu.memory_space<vmem>>, %arg2: memref<10x1xf32, #tpu.memory_space<vmem>>, %arg3: memref<10x1xf32, #tpu.memory_space<vmem>>, %arg4: memref<1x1xf32, #tpu.memory_space<vmem>>, %arg5: memref<1x128xf32, #tpu.memory_space<vmem>>) attributes {dimension_semantics = [], scalar_prefetch = 0 : i64, scratch_operands = 0 : i64, tpu.core_type = #tpu.core_type<tc>} {
    %c0 = arith.constant 0 : index
    %c0_0 = arith.constant 0 : index
    %0 = vector.load %arg0[%c0, %c0_0] : memref<1x128xf32, #tpu.memory_space<vmem>>, vector<1x128xf32>
    %c0_1 = arith.constant 0 : index
    %c0_2 = arith.constant 0 : index
    %1 = vector.load %arg1[%c0_1, %c0_2] : memref<10x1xf32, #tpu.memory_space<vmem>>, vector<10x1xf32>
    %2 = vector.broadcast %1 : vector<10x1xf32> to vector<10x128xf32>
    %3 = vector.broadcast %0 : vector<1x128xf32> to vector<10x128xf32>
    %4 = arith.mulf %2, %3 : vector<10x128xf32>
    %c0_3 = arith.constant 0 : index
    %c0_4 = arith.constant 0 : index
    %5 = vector.load %arg2[%c0_3, %c0_4] : memref<10x1xf32, #tpu.memory_space<vmem>>, vector<10x1xf32>
    %6 = vector.broadcast %5 : vector<10x1xf32> to vector<10x128xf32>
    %7 = arith.addf %4, %6 : vector<10x128xf32>
    %8 = math.tanh %7 : vector<10x128xf32>
    %c0_5 = arith.constant 0 : index
    %c0_6 = arith.constant 0 : index
    %9 = vector.load %arg3[%c0_5, %c0_6] : memref<10x1xf32, #tpu.memory_space<vmem>>, vector<10x1xf32>
    %10 = vector.broadcast %9 : vector<10x1xf32> to vector<10x128xf32>
    %11 = arith.mulf %10, %8 : vector<10x128xf32>
    %cst = arith.constant dense<0.000000e+00> : vector<128xf32>
    %12 = vector.multi_reduction <add>, %11, %cst [0] : vector<10x128xf32> to vector<128xf32>
    %13 = vector.shape_cast %12 : vector<128xf32> to vector<1x128xf32>
    %c0_7 = arith.constant 0 : index
    %c0_8 = arith.constant 0 : index
    %14 = vector.load %arg4[%c0_7, %c0_8] : memref<1x1xf32, #tpu.memory_space<vmem>>, vector<1x1xf32>
    %15 = vector.broadcast %14 : vector<1x1xf32> to vector<1x128xf32>
    %16 = arith.addf %13, %15 : vector<1x128xf32>
    %17 = math.tanh %16 : vector<1x128xf32>
    %c0_9 = arith.constant 0 : index
    %c0_10 = arith.constant 0 : index
    %18 = vector.load %arg5[%c0_9, %c0_10] : memref<1x128xf32, #tpu.memory_space<vmem>>, vector<1x128xf32>
    tpu.vector_store %arg5[%c0_9, %c0_10], %17 {strides = array<i32>} : memref<1x128xf32, #tpu.memory_space<vmem>>, vector<1x128xf32>,
    return
  }
}

</mosaic_0001>

<llo_original>
// kernel: tpu_custom_call.1
$region0: #{tpu_custom_call.1}
  #allocation0 [shape = 'u32[]', space=smem, size = 0x4, offset = 0x4, fixed_abs, tag = 'smem constant byte address 0x4 - core index']
  #allocation1 [shape = 'u32[144,128]{1,0:T(1,128)}', space=vmem, size = 0x12000, scoped, tag = 'internal scratch']
  #allocation2 [shape = 'f32[1,1]{1,0:T(1,128)S(1)}', space=vmem, size = 0x200, scoped, tag = 'scoped memory for tpu_custom_call.1']
  %s0 = inlined_call_operand.vmem [shape: f32[1,128], index: 0, kind: input, shape index: {}]
  %s1 = inlined_call_operand.vmem [shape: f32[10,1], index: 1, kind: input, shape index: {}]
  %s2 = inlined_call_operand.vmem [shape: f32[10,1], index: 2, kind: input, shape index: {}]
  %s3 = inlined_call_operand.vmem [shape: f32[10,1], index: 3, kind: input, shape index: {}]
  %s4 = inlined_call_operand.<no memory space> [shape: f32[1,1], index: 4, kind: input, shape index: {}]
  %s5 = inlined_call_operand.hbm [shape: f32[1,128], index: 5, kind: output, shape index: {}]
  %s6 = sld [smem:[#allocation0]]
  $region30: #{tpu_custom_call.1} parent=0
    _
  %s8 = ssub.s32 1, %s6
  %s9 = scalar_select 0, %s8, %s6
  %v10 = vstv %s4
  %11 = vst [vmem:[#allocation2] sm:$0x1] %v10
  $region1: #{tpu_custom_call.1} parent=0
    #allocation3 [shape = 'u8[512]{0}', space=vmem, size = 0x400, scoped, tag = 'output window, operand 0, single buffered']
    #allocation4 [shape = 's32[1]{0}', space=sflag, size = 0x4, scoped, tag = 'scoped memory for tpu_custom_call.1']
    %12 = vsyncpa [#allocation4], 0
    // Predicated region
    $region2: #{tpu_custom_call.1} parent=1 // pred_check
      _
    $region3: #{tpu_custom_call.1} parent=1 // pred_check_branch
      %14 = sbr.rel (0) target = $region5
    $region4: #{tpu_custom_call.1} parent=1 // pred_region
      _
    $region5: #{tpu_custom_call.1} parent=1 // pred_fallthru
      _
    // Predicated region
    $region6: #{tpu_custom_call.1} parent=1 // pred_check
      _
    $region7: #{tpu_custom_call.1} parent=1 // pred_check_branch
      %16 = sbr.rel (0) target = $region9
    $region8: #{tpu_custom_call.1} parent=1 // pred_region
      _
    $region9: #{tpu_custom_call.1} parent=1 // pred_fallthru
      _
    // Predicated region
    $region10: #{tpu_custom_call.1} parent=1 // pred_check
      _
    $region11: #{tpu_custom_call.1} parent=1 // pred_check_branch
      %18 = sbr.rel (0) target = $region13
    $region12: #{tpu_custom_call.1} parent=1 // pred_region
      _
    $region13: #{tpu_custom_call.1} parent=1 // pred_fallthru
      _
    // Predicated region
    $region14: #{tpu_custom_call.1} parent=1 // pred_check
      _
    $region15: #{tpu_custom_call.1} parent=1 // pred_check_branch
      %20 = sbr.rel (0) target = $region17
    $region16: #{tpu_custom_call.1} parent=1 // pred_region
      _
    $region17: #{tpu_custom_call.1} parent=1 // pred_fallthru
      _
    // Predicated region
    $region18: #{tpu_custom_call.1} parent=1 // pred_check
      _
    $region19: #{tpu_custom_call.1} parent=1 // pred_check_branch
      %22 = sbr.rel (0) target = $region21
    $region20: #{tpu_custom_call.1} parent=1 // pred_region
      _
    $region21: #{tpu_custom_call.1} parent=1 // pred_fallthru
      _
    %v23 = vld [vmem:[%s0] sm:$0x1]
    %v24 = vld [vmem:[%s1] sm:$0xff]
    %v25 = vld [vmem:[%s1 + $0x8] sm:$0x3]
    %27 = vset.pattern.permute.xlu0 0
    %28 = vperm.xlu0 %27, %v24
    %v29 = vpop.permute.xlu0 %28
    %32 = vset.pattern.permute.xlu0 0
    %33 = vperm.xlu0 %32, %v25
    %v34 = vpop.permute.xlu0 %33
    %v37 = vlaneseq
    %v38 = vshrl.u32 %v37, 7
    %v39 = vsub.s32 0, %v38
    %v40 = vrot.slane %v23, %v39
    %v42 = vmul.f32 %v29, %v40
    %v43 = vmul.f32 %v34, %v40
    %v44 = vld [vmem:[%s2] sm:$0xff]
    %v45 = vld [vmem:[%s2 + $0x8] sm:$0x3]
    %47 = vset.pattern.permute.xlu0 0
    %48 = vperm.xlu0 %47, %v44
    %v49 = vpop.permute.xlu0 %48
    %52 = vset.pattern.permute.xlu0 0
    %53 = vperm.xlu0 %52, %v45
    %v54 = vpop.permute.xlu0 %53
    %v56 = vadd.f32 %v42, %v49
    %v57 = vadd.f32 %v43, %v54
    %v58 = vtanh.pop %v56
    %v59 = vtanh.pop %v57
    %v60 = vld [vmem:[%s3] sm:$0xff]
    %v61 = vld [vmem:[%s3 + $0x8] sm:$0x3]
    %63 = vset.pattern.permute.xlu0 0
    %64 = vperm.xlu0 %63, %v60
    %v65 = vpop.permute.xlu0 %64
    %68 = vset.pattern.permute.xlu0 0
    %69 = vperm.xlu0 %68, %v61
    %v70 = vpop.permute.xlu0 %69
    %v72 = vmul.f32 %v65, %v58
    %v73 = vmul.f32 %v70, %v59
    %vm74 = vcmask 1041408
    %v75 = vsel %vm74, %v73, 0.0
    %v76 = vadd.f32 %v72, %v75
    %v77 = vrot.slane %v76, 4
    %v78 = vadd.f32 %v76, %v77
    %v79 = vrot.slane %v78, 2
    %v80 = vadd.f32 %v78, %v79
    %v81 = vrot.slane %v80, 1
    %v82 = vadd.f32 %v80, %v81
    %v83 = vld [vmem:[#allocation2] sm:$0x1]
    %85 = vset.pattern.permute.xlu0 0
    %86 = vperm.xlu0 %85, %v83
    %v87 = vpop.permute.xlu0 %86
    %v89 = vlaneseq
    %v90 = vshrl.u32 %v89, 7
    %v91 = vsub.s32 0, %v90
    %v92 = vrot.slane %v87, %v91
    %v93 = vadd.f32 %v82, %v92
    %v94 = vtanh.pop %v93
    %95 = vst [vmem:[#allocation3] sm:$0x1] %v94
    // Predicated region
    $region22: #{tpu_custom_call.1} parent=1 // pred_check
      _
    $region23: #{tpu_custom_call.1} parent=1 // pred_check_branch
      %97 = sbr.rel (0) target = $region25
    $region24: #{tpu_custom_call.1} parent=1 // pred_region
      %s99 = ssub.s32 16, 16
      %100 = vsyncadd [#allocation4], %s99
      %s102 = sshll.u32 [#allocation3], 4
      %s103 = int_to_ptr.vmem [resolvable:$true] %s102
      %105 = dma.vmem_to_hbm [thread:$0]  %s103, 16, %s5, [#allocation4]
    $region25: #{tpu_custom_call.1} parent=1 // pred_fallthru
      _
    // Predicated region
    $region26: #{tpu_custom_call.1} parent=1 // pred_check
      _
    $region27: #{tpu_custom_call.1} parent=1 // pred_check_branch
      %107 = sbr.rel (0) target = $region29
    $region28: #{tpu_custom_call.1} parent=1 // pred_region
      %108 = dma.done [#allocation4], 16
    $region29: #{tpu_custom_call.1} parent=1 // pred_fallthru
      _
    %109 = vsyncpa [#allocation4], 1

</llo_original>
